<compile_context>
chip_gen: v7x
topology: tpu7x:2x2x1
jax: 0.10.0
libtpu: 0.0.40
codegen_flags: <defaults>
</compile_context>

<pallas_src>
import jax
import jax.numpy as jnp
from jax.experimental import pallas as pl
from jax.experimental.pallas import tpu as pltpu


def _head_kernel(tp_ref, vp_ref, w_ref, out_ref):
    """Fused [Linear -> BatchNorm1d(train) -> LeakyReLU(0.2)] x2 + classifier.

    w_ref is one packed parameter slab of shape (R+3, 2L+S), R = max(HT+HV, 2L):
      rows [0:HT,      0:L   ]  textual Linear weight
      rows [HT:HT+HV,  L:2L  ]  visual Linear weight    (block diagonal)
      rows [0:2L,     2L:2L+S]  classifier weight
      row   R,         0:2L     BatchNorm gamma (textual ++ visual)
      row   R+1,       0:2L     BatchNorm beta
      row   R+2,       0:S      classifier bias
    """
    HT = tp_ref.shape[-1]
    HV = vp_ref.shape[-1]
    S = out_ref.shape[-1]
    L2 = w_ref.shape[-1] - S
    R = w_ref.shape[0] - 3

    # Two MXU pushes against the row-halves of the block-diagonal head weight
    # == the two per-modality Linears producing the concatenated (B, 2L)
    # features, with no concat of the inputs anywhere.
    # Linear biases are intentionally omitted: a constant per-feature shift
    # cancels exactly under the training-mode BatchNorm that follows.
    h = jnp.dot(tp_ref[...], w_ref[0:HT, 0:L2],
                preferred_element_type=jnp.float32)
    h = h + jnp.dot(vp_ref[...], w_ref[HT:HT + HV, 0:L2],
                    preferred_element_type=jnp.float32)              # (B, 2L)

    # BatchNorm1d (training mode): batch mean, biased variance (one pass),
    # eps=1e-5, affine gamma/beta.
    m1 = jnp.mean(h, axis=0, keepdims=True)                          # (1, 2L)
    m2 = jnp.mean(h * h, axis=0, keepdims=True)
    var = m2 - m1 * m1
    gamma = w_ref[R:R + 1, 0:L2]
    beta = w_ref[R + 1:R + 2, 0:L2]
    hn = (h - m1) * jax.lax.rsqrt(var + 1e-5) * gamma + beta
    a = jnp.where(hn > 0, hn, 0.2 * hn)                              # LeakyReLU(0.2)

    # Classifier on concat([t, v], -1) == one dot against the (2L, S) weight.
    logits = jnp.dot(a, w_ref[0:L2, L2:L2 + S],
                     preferred_element_type=jnp.float32)
    logits = logits + w_ref[R + 2:R + 3, 0:S]                        # classifier bias
    out_ref[...] = logits.astype(out_ref.dtype)


def pack_params(params):
    """One-time (init-path) packing of all head parameters into a single slab."""
    wt, wv, wc = params["wt"], params["wv"], params["wc"]
    HT, L = wt.shape
    HV = wv.shape[0]
    S = wc.shape[1]
    L2 = 2 * L
    R = max(HT + HV, L2)
    slab = jnp.zeros((R + 3, L2 + S), jnp.float32)
    slab = slab.at[:HT, :L].set(wt)
    slab = slab.at[HT:HT + HV, L:L2].set(wv)                        # block diagonal
    slab = slab.at[:L2, L2:].set(wc)
    slab = slab.at[R, :L2].set(
        jnp.concatenate([params["gt"], params["gv"]], axis=-1)[0])
    slab = slab.at[R + 1, :L2].set(
        jnp.concatenate([params["bet"], params["bev"]], axis=-1)[0])
    slab = slab.at[R + 2, :S].set(params["bc"][0])
    # NOTE: the Linear biases bt/bv are NOT packed: they cancel exactly under
    # the training-mode BatchNorm inside the kernel.
    return slab


def multimodal_head(tp, vp, slab, label_size):
    """Single forward of the head: one pallas_call, three operands, no concat."""
    B = tp.shape[0]
    return pl.pallas_call(
        _head_kernel,
        out_shape=jax.ShapeDtypeStruct((B, label_size), jnp.float32),
        grid=(),
        in_specs=[
            pl.BlockSpec(tp.shape, lambda: (0, 0)),
            pl.BlockSpec(vp.shape, lambda: (0, 0)),
            pl.BlockSpec(slab.shape, lambda: (0, 0)),
        ],
        out_specs=pl.BlockSpec((B, label_size), lambda: (0, 0)),
    )(tp, vp, slab)


def multimodal_head_batched(tp_stack, vp_stack, slab, label_size):
    """N independent head invocations amortized into one pallas_call.

    grid=(N,) with "parallel" semantics so v7x's two TensorCores split the
    batched axis; each grid step normalizes its own (B, 2L) batch, which is
    exactly the semantics of N separate forward calls.
    """
    N, B, HT = tp_stack.shape
    HV = vp_stack.shape[-1]
    return pl.pallas_call(
        _head_kernel,
        out_shape=jax.ShapeDtypeStruct((N, B, label_size), jnp.float32),
        grid=(N,),
        in_specs=[
            pl.BlockSpec((None, B, HT), lambda n: (n, 0, 0)),
            pl.BlockSpec((None, B, HV), lambda n: (n, 0, 0)),
            pl.BlockSpec(slab.shape, lambda n: (0, 0)),
        ],
        out_specs=pl.BlockSpec((None, B, label_size), lambda n: (n, 0, 0)),
        compiler_params=pltpu.CompilerParams(dimension_semantics=("parallel",)),
    )(tp_stack, vp_stack, slab)


def reference(tp, vp, p):
    """PyTorch-faithful reference (keeps the pre-BN Linear biases, two-pass var)."""
    def head(x, w, b, g, be):
        h = x @ w + b
        mean = jnp.mean(h, axis=0, keepdims=True)
        var = jnp.mean((h - mean) ** 2, axis=0, keepdims=True)
        hn = (h - mean) / jnp.sqrt(var + 1e-5) * g + be
        return jnp.where(hn > 0, hn, 0.2 * hn)

    t = head(tp, p["wt"], p["bt"], p["gt"], p["bet"])
    v = head(vp, p["wv"], p["bv"], p["gv"], p["bev"])
    return jnp.concatenate([t, v], axis=-1) @ p["wc"] + p["bc"]


if __name__ == "__main__":
    # Small shapes consistent with the module's head:
    #   textual/visual hidden_size = 32, linear_injection = 32, label_size = 8
    B, HT, HV, L, S = 8, 32, 32, 32, 8

    key = jax.random.PRNGKey(0)
    ks = jax.random.split(key, 14)

    # "pooler_output" of the two (un-translated) transformer backbones.
    textual_pooled = jax.random.normal(ks[0], (B, HT), jnp.float32)
    visual_pooled = jax.random.normal(ks[1], (B, HV), jnp.float32)

    def lin_init(kw, kb, fan_in, fan_out):
        bound = 1.0 / jnp.sqrt(fan_in)
        w = jax.random.uniform(kw, (fan_in, fan_out), jnp.float32, -bound, bound)
        b = jax.random.uniform(kb, (1, fan_out), jnp.float32, -bound, bound)
        return w, b

    wt, bt = lin_init(ks[2], ks[3], HT, L)
    wv, bv = lin_init(ks[4], ks[5], HV, L)
    wc, bc = lin_init(ks[6], ks[7], 2 * L, S)

    params = dict(
        wt=wt, bt=bt,
        gt=1.0 + 0.1 * jax.random.normal(ks[8], (1, L), jnp.float32),
        bet=0.1 * jax.random.normal(ks[9], (1, L), jnp.float32),
        wv=wv, bv=bv,
        gv=1.0 + 0.1 * jax.random.normal(ks[10], (1, L), jnp.float32),
        bev=0.1 * jax.random.normal(ks[11], (1, L), jnp.float32),
        wc=wc, bc=bc,
    )

    # Parameter packing happens once at init (hoisted off the per-call path).
    slab = jax.block_until_ready(pack_params(params))

    # --- single-call path ---
    out = multimodal_head(textual_pooled, visual_pooled, slab, S)
    jax.block_until_ready(out)
    ref = reference(textual_pooled, visual_pooled, params)
    assert out.shape == (B, S)
    assert jnp.allclose(out, ref, atol=1e-4, rtol=1e-4), "mismatch vs JAX reference"

    # --- batched path (N forwards in one launch, parallel grid) ---
    N = 4
    tp_stack = jax.random.normal(ks[12], (N, B, HT), jnp.float32)
    vp_stack = jax.random.normal(ks[13], (N, B, HV), jnp.float32)
    out_b = multimodal_head_batched(tp_stack, vp_stack, slab, S)
    jax.block_until_ready(out_b)
    assert out_b.shape == (N, B, S)
    ref_b = jnp.stack(
        [reference(tp_stack[n], vp_stack[n], params) for n in range(N)])
    assert jnp.allclose(out_b, ref_b, atol=1e-4, rtol=1e-4), "batched mismatch"

    print("KERNEL_OK")
</pallas_src>

<mosaic_0001>
module attributes {stable_mosaic.version = 11 : i64} {
  func.func @_head_kernel(%arg0: memref<8x32xf32, #tpu.memory_space<vmem>>, %arg1: memref<8x32xf32, #tpu.memory_space<vmem>>, %arg2: memref<67x72xf32, #tpu.memory_space<vmem>>, %arg3: memref<8x8xf32, #tpu.memory_space<vmem>>) attributes {dimension_semantics = [], scalar_prefetch = 0 : i64, scratch_operands = 0 : i64, tpu.core_type = #tpu.core_type<tc>} {
    %c0 = arith.constant 0 : index
    %c0_0 = arith.constant 0 : index
    %0 = vector.load %arg0[%c0, %c0_0] : memref<8x32xf32, #tpu.memory_space<vmem>>, vector<8x32xf32>
    %c0_1 = arith.constant 0 : index
    %c0_2 = arith.constant 0 : index
    %1 = vector.load %arg2[%c0_1, %c0_2] : memref<67x72xf32, #tpu.memory_space<vmem>>, vector<32x64xf32>
    %cst = arith.constant dense<0.000000e+00> : vector<8x64xf32>
    %2 = tpu.matmul %0, %1, %cst {dimension_numbers = #tpu.dot_dimension_numbers<[1], [0], [0], [1], [0, 0, 1, 1], [], []>} : vector<8x32xf32>, vector<32x64xf32>, vector<8x64xf32> -> vector<8x64xf32>
    %c0_3 = arith.constant 0 : index
    %c0_4 = arith.constant 0 : index
    %3 = vector.load %arg1[%c0_3, %c0_4] : memref<8x32xf32, #tpu.memory_space<vmem>>, vector<8x32xf32>
    %c32 = arith.constant 32 : index
    %c0_5 = arith.constant 0 : index
    %4 = vector.load %arg2[%c32, %c0_5] : memref<67x72xf32, #tpu.memory_space<vmem>>, vector<32x64xf32>
    %cst_6 = arith.constant dense<0.000000e+00> : vector<8x64xf32>
    %5 = tpu.matmul %3, %4, %cst_6 {dimension_numbers = #tpu.dot_dimension_numbers<[1], [0], [0], [1], [0, 0, 1, 1], [], []>} : vector<8x32xf32>, vector<32x64xf32>, vector<8x64xf32> -> vector<8x64xf32>
    %6 = arith.addf %2, %5 : vector<8x64xf32>
    %cst_7 = arith.constant dense<0.000000e+00> : vector<64xf32>
    %7 = vector.multi_reduction <add>, %6, %cst_7 [0] : vector<8x64xf32> to vector<64xf32>
    %8 = vector.shape_cast %7 : vector<64xf32> to vector<1x64xf32>
    %cst_8 = arith.constant 8.000000e+00 : f32
    %9 = vector.broadcast %cst_8 : f32 to vector<1x64xf32>
    %10 = arith.divf %8, %9 : vector<1x64xf32>
    %11 = arith.mulf %6, %6 : vector<8x64xf32>
    %cst_9 = arith.constant dense<0.000000e+00> : vector<64xf32>
    %12 = vector.multi_reduction <add>, %11, %cst_9 [0] : vector<8x64xf32> to vector<64xf32>
    %13 = vector.shape_cast %12 : vector<64xf32> to vector<1x64xf32>
    %cst_10 = arith.constant 8.000000e+00 : f32
    %14 = vector.broadcast %cst_10 : f32 to vector<1x64xf32>
    %15 = arith.divf %13, %14 : vector<1x64xf32>
    %16 = arith.mulf %10, %10 : vector<1x64xf32>
    %17 = arith.subf %15, %16 : vector<1x64xf32>
    %c64 = arith.constant 64 : index
    %c0_11 = arith.constant 0 : index
    %18 = vector.load %arg2[%c64, %c0_11] : memref<67x72xf32, #tpu.memory_space<vmem>>, vector<1x64xf32>
    %c65 = arith.constant 65 : index
    %c0_12 = arith.constant 0 : index
    %19 = vector.load %arg2[%c65, %c0_12] : memref<67x72xf32, #tpu.memory_space<vmem>>, vector<1x64xf32>
    %20 = vector.broadcast %10 : vector<1x64xf32> to vector<8x64xf32>
    %21 = arith.subf %6, %20 : vector<8x64xf32>
    %cst_13 = arith.constant 9.99999974E-6 : f32
    %22 = vector.broadcast %cst_13 : f32 to vector<1x64xf32>
    %23 = arith.addf %17, %22 : vector<1x64xf32>
    %24 = math.rsqrt %23 : vector<1x64xf32>
    %25 = vector.broadcast %24 : vector<1x64xf32> to vector<8x64xf32>
    %26 = arith.mulf %21, %25 : vector<8x64xf32>
    %27 = vector.broadcast %18 : vector<1x64xf32> to vector<8x64xf32>
    %28 = arith.mulf %26, %27 : vector<8x64xf32>
    %29 = vector.broadcast %19 : vector<1x64xf32> to vector<8x64xf32>
    %30 = arith.addf %28, %29 : vector<8x64xf32>
    %cst_14 = arith.constant 0.000000e+00 : f32
    %31 = vector.broadcast %cst_14 : f32 to vector<8x64xf32>
    %32 = arith.cmpf ogt, %30, %31 : vector<8x64xf32>
    %cst_15 = arith.constant 2.000000e-01 : f32
    %33 = vector.broadcast %cst_15 : f32 to vector<8x64xf32>
    %34 = arith.mulf %33, %30 : vector<8x64xf32>
    %35 = arith.select %32, %30, %34 : vector<8x64xi1>, vector<8x64xf32>
    %c0_16 = arith.constant 0 : index
    %c64_17 = arith.constant 64 : index
    %36 = vector.load %arg2[%c0_16, %c64_17] : memref<67x72xf32, #tpu.memory_space<vmem>>, vector<64x8xf32>
    %cst_18 = arith.constant dense<0.000000e+00> : vector<8x8xf32>
    %37 = tpu.matmul %35, %36, %cst_18 {dimension_numbers = #tpu.dot_dimension_numbers<[1], [0], [0], [1], [0, 0, 1, 1], [], []>} : vector<8x64xf32>, vector<64x8xf32>, vector<8x8xf32> -> vector<8x8xf32>
    %c66 = arith.constant 66 : index
    %c0_19 = arith.constant 0 : index
    %38 = vector.load %arg2[%c66, %c0_19] : memref<67x72xf32, #tpu.memory_space<vmem>>, vector<1x8xf32>
    %39 = vector.broadcast %38 : vector<1x8xf32> to vector<8x8xf32>
    %40 = arith.addf %37, %39 : vector<8x8xf32>
    %c0_20 = arith.constant 0 : index
    %c0_21 = arith.constant 0 : index
    %41 = vector.load %arg3[%c0_20, %c0_21] : memref<8x8xf32, #tpu.memory_space<vmem>>, vector<8x8xf32>
    tpu.vector_store %arg3[%c0_20, %c0_21], %40 {strides = array<i32>} : memref<8x8xf32, #tpu.memory_space<vmem>>, vector<8x8xf32>,
    return
  }
}

</mosaic_0001>

<llo_original>
// kernel: tpu_custom_call.1
$region0: #{tpu_custom_call.1}
  #allocation0 [shape = 'u32[]', space=smem, size = 0x4, offset = 0x4, fixed_abs, tag = 'smem constant byte address 0x4 - core index']
  #allocation1 [shape = 'u32[144,128]{1,0:T(1,128)}', space=vmem, size = 0x12000, scoped, tag = 'internal scratch']
  %s0 = inlined_call_operand.hbm [shape: f32[8,32], index: 0, kind: input, shape index: {}]
  %s1 = inlined_call_operand.hbm [shape: f32[8,32], index: 1, kind: input, shape index: {}]
  %s2 = inlined_call_operand.hbm [shape: f32[67,72], index: 2, kind: input, shape index: {}]
  %s3 = inlined_call_operand.hbm [shape: f32[8,8], index: 3, kind: output, shape index: {}]
  %s4 = sld [smem:[#allocation0]]
  $region34: #{tpu_custom_call.1} parent=0
    _
  %s6 = ssub.s32 1, %s4
  %s7 = scalar_select 0, %s6, %s4
  $region1: #{tpu_custom_call.1} parent=0
    #allocation2 [shape = 'u8[4096]{0}', space=vmem, size = 0x1000, scoped, tag = 'input window, operand 0, single buffered']
    #allocation3 [shape = 's32[1]{0}', space=sflag, size = 0x4, scoped, tag = 'scoped memory for tpu_custom_call.1']
    #allocation4 [shape = 's32[1]{0}', space=sflag, size = 0x4, scoped, tag = 'scoped memory for tpu_custom_call.1']
    #allocation5 [shape = 'u8[4096]{0}', space=vmem, size = 0x1000, scoped, tag = 'input window, operand 1, single buffered']
    #allocation6 [shape = 's32[1]{0}', space=sflag, size = 0x4, scoped, tag = 'scoped memory for tpu_custom_call.1']
    #allocation7 [shape = 'u8[36864]{0}', space=vmem, size = 0x9000, scoped, tag = 'input window, operand 2, single buffered']
    #allocation8 [shape = 'u8[4096]{0}', space=vmem, size = 0x1000, scoped, tag = 'output window, operand 0, single buffered']
    %8 = vsyncpa [#allocation3], 0
    %9 = vsyncpa [#allocation6], 0
    %10 = vsyncpa [#allocation4], 0
    // Predicated region
    $region2: #{tpu_custom_call.1} parent=1 // pred_check
      _
    $region3: #{tpu_custom_call.1} parent=1 // pred_check_branch
      %12 = sbr.rel (0) target = $region5
    $region4: #{tpu_custom_call.1} parent=1 // pred_region
      %s14 = ssub.s32 128, 128
      %15 = vsyncadd [#allocation3], %s14
      %s17 = sshll.u32 [#allocation2], 4
      %s18 = int_to_ptr.vmem [resolvable:$true] %s17
      %20 = dma.hbm_to_vmem [thread:$0]  %s0, 128, %s18, [#allocation3]
    $region5: #{tpu_custom_call.1} parent=1 // pred_fallthru
      _
    // Predicated region
    $region6: #{tpu_custom_call.1} parent=1 // pred_check
      _
    $region7: #{tpu_custom_call.1} parent=1 // pred_check_branch
      %22 = sbr.rel (0) target = $region9
    $region8: #{tpu_custom_call.1} parent=1 // pred_region
      %s24 = ssub.s32 128, 128
      %25 = vsyncadd [#allocation6], %s24
      %s27 = sshll.u32 [#allocation5], 4
      %s28 = int_to_ptr.vmem [resolvable:$true] %s27
      %30 = dma.hbm_to_vmem [thread:$0]  %s1, 128, %s28, [#allocation6]
    $region9: #{tpu_custom_call.1} parent=1 // pred_fallthru
      _
    // Predicated region
    $region10: #{tpu_custom_call.1} parent=1 // pred_check
      _
    $region11: #{tpu_custom_call.1} parent=1 // pred_check_branch
      %32 = sbr.rel (0) target = $region13
    $region12: #{tpu_custom_call.1} parent=1 // pred_region
      %s34 = ssub.s32 1152, 1152
      %35 = vsyncadd [#allocation6], %s34
      %s36 = sshll.u32 [#allocation7], 4
      %s37 = int_to_ptr.vmem [resolvable:$true] %s36
      %42 = dma.hbm_to_vmem [thread:$0]  %s2, 1152, %s37, [#allocation6], 128, 128, 8
    $region13: #{tpu_custom_call.1} parent=1 // pred_fallthru
      _
    // Predicated region
    $region14: #{tpu_custom_call.1} parent=1 // pred_check
      _
    $region15: #{tpu_custom_call.1} parent=1 // pred_check_branch
      %44 = sbr.rel (0) target = $region17
    $region16: #{tpu_custom_call.1} parent=1 // pred_region
      %45 = dma.done [#allocation3], 128
    $region17: #{tpu_custom_call.1} parent=1 // pred_fallthru
      _
    // Predicated region
    $region18: #{tpu_custom_call.1} parent=1 // pred_check
      _
    $region19: #{tpu_custom_call.1} parent=1 // pred_check_branch
      %47 = sbr.rel (0) target = $region21
    $region20: #{tpu_custom_call.1} parent=1 // pred_region
      %48 = dma.done [#allocation6], 128
    $region21: #{tpu_custom_call.1} parent=1 // pred_fallthru
      _
    // Predicated region
    $region22: #{tpu_custom_call.1} parent=1 // pred_check
      _
    $region23: #{tpu_custom_call.1} parent=1 // pred_check_branch
      %50 = sbr.rel (0) target = $region25
    $region24: #{tpu_custom_call.1} parent=1 // pred_region
      %51 = dma.done [#allocation6], 1152
    $region25: #{tpu_custom_call.1} parent=1 // pred_fallthru
      _
    %v52 = vld [vmem:[#allocation2] sm:$0xff]
    %v53 = vld [vmem:[#allocation7] sm:$0xff]
    %v54 = vld [vmem:[#allocation7 + $0x8] sm:$0xff]
    %v55 = vld [vmem:[#allocation7 + $0x10] sm:$0xff]
    %v56 = vld [vmem:[#allocation7 + $0x18] sm:$0xff]
    %v57 = vld [vmem:[#allocation5] sm:$0xff]
    %v58 = vld [vmem:[#allocation7 + $0x20] sm:$0xff]
    %v59 = vld [vmem:[#allocation7 + $0x28] sm:$0xff]
    %v60 = vld [vmem:[#allocation7 + $0x30] sm:$0xff]
    %v61 = vld [vmem:[#allocation7 + $0x38] sm:$0xff]
    %vm62 = vcmask 261120
    %v64 = vsel %vm62, %v57, 0
    %66 = vmatprep.subr.mxu0 0.0
    %67 = vmatpush1.msra.mxu0 %v58
    %68 = vmatprep.subr.mxu0 0.0
    %69 = vmatpush1.msra.mxu0 %v59
    %70 = vmatprep.subr.mxu0 0.0
    %71 = vmatpush1.msra.mxu0 %v60
    %72 = vmatprep.subr.mxu0 0.0
    %73 = vmatpush1.msra.mxu0 %v61
    %74 = vmatprep.subr.mxu0 0.0
    %75 = vmatpush1.msra.mxu0 0.0
    %76 = vmatprep.subr.mxu0 0.0
    %77 = vmatpush1.msra.mxu0 0.0
    %78 = vmatprep.subr.mxu0 0.0
    %79 = vmatpush1.msra.mxu0 0.0
    %80 = vmatprep.subr.mxu0 0.0
    %81 = vmatpush1.msra.mxu0 0.0
    %82 = vmatprep.subr.mxu0 0.0
    %83 = vmatpush1.msra.mxu0 0.0
    %84 = vmatprep.subr.mxu0 0.0
    %85 = vmatpush1.msra.mxu0 0.0
    %86 = vmatprep.subr.mxu0 0.0
    %87 = vmatpush1.msra.mxu0 0.0
    %88 = vmatprep.subr.mxu0 0.0
    %89 = vmatpush1.msra.mxu0 0.0
    %90 = vmatprep.subr.mxu0 0.0
    %91 = vmatpush1.msra.mxu0 0.0
    %92 = vmatprep.subr.mxu0 0.0
    %93 = vmatpush1.msra.mxu0 0.0
    %94 = vmatprep.subr.mxu0 0.0
    %95 = vmatpush1.msra.mxu0 0.0
    %96 = vmatprep.subr.mxu0 0.0
    %97 = vmatpush1.msra.mxu0 0.0
    %98 = vmatprep.subr.mxu0 0.0
    %99 = vmatpush1.msra.mxu0 0.0
    %100 = vmatprep.subr.mxu0 0.0
    %101 = vmatpush1.msra.mxu0 0.0
    %102 = vmatprep.subr.mxu0 0.0
    %103 = vmatpush1.msra.mxu0 0.0
    %104 = vmatprep.subr.mxu0 0.0
    %105 = vmatpush1.msra.mxu0 0.0
    %106 = vmatprep.subr.mxu0 0.0
    %107 = vmatpush1.msra.mxu0 0.0
    %108 = vmatprep.subr.mxu0 0.0
    %109 = vmatpush1.msra.mxu0 0.0
    %110 = vmatprep.subr.mxu0 0.0
    %111 = vmatpush1.msra.mxu0 0.0
    %112 = vmatprep.subr.mxu0 0.0
    %113 = vmatpush1.msra.mxu0 0.0
    %114 = vmatprep.subr.mxu0 0.0
    %115 = vmatpush1.msra.mxu0 0.0
    %116 = vmatprep.subr.mxu0 0.0
    %117 = vmatpush1.msra.mxu0 0.0
    %118 = vmatprep.subr.mxu0 0.0
    %119 = vmatpush1.msra.mxu0 0.0
    %120 = vmatprep.subr.mxu0 0.0
    %121 = vmatpush1.msra.mxu0 0.0
    %122 = vmatprep.subr.mxu0 0.0
    %123 = vmatpush1.msra.mxu0 0.0
    %124 = vmatprep.subr.mxu0 0.0
    %125 = vmatpush1.msra.mxu0 0.0
    %126 = vmatprep.subr.mxu0 0.0
    %127 = vmatpush1.msra.mxu0 0.0
    %128 = vmatprep.subr.mxu0 0.0
    %129 = vmatpush1.msra.mxu0 0.0
    %130 = vmatprep.mubr.f32.mxu0 0.0
    %131 = vmatmul.mubr.f32.gmra.mrb[0].mxu0 %v64
    %v132 = vpop.f32.mrb[0].mxu0
    %v133 = vadd.f32 0.0, %v132
    %v134 = vpop.f32.mrb[0].mxu0
    %135 = vdwg.mxu0
    %v137 = vsel %vm62, %v52, 0
    %139 = vmatprep.subr.mxu0 0.0
    %140 = vmatpush1.msra.mxu0 %v53
    %141 = vmatprep.subr.mxu0 0.0
    %142 = vmatpush1.msra.mxu0 %v54
    %143 = vmatprep.subr.mxu0 0.0
    %144 = vmatpush1.msra.mxu0 %v55
    %145 = vmatprep.subr.mxu0 0.0
    %146 = vmatpush1.msra.mxu0 %v56
    %147 = vmatprep.subr.mxu0 0.0
    %148 = vmatpush1.msra.mxu0 0.0
    %149 = vmatprep.subr.mxu0 0.0
    %150 = vmatpush1.msra.mxu0 0.0
    %151 = vmatprep.subr.mxu0 0.0
    %152 = vmatpush1.msra.mxu0 0.0
    %153 = vmatprep.subr.mxu0 0.0
    %154 = vmatpush1.msra.mxu0 0.0
    %155 = vmatprep.subr.mxu0 0.0
    %156 = vmatpush1.msra.mxu0 0.0
    %157 = vmatprep.subr.mxu0 0.0
    %158 = vmatpush1.msra.mxu0 0.0
    %159 = vmatprep.subr.mxu0 0.0
    %160 = vmatpush1.msra.mxu0 0.0
    %161 = vmatprep.subr.mxu0 0.0
    %162 = vmatpush1.msra.mxu0 0.0
    %163 = vmatprep.subr.mxu0 0.0
    %164 = vmatpush1.msra.mxu0 0.0
    %165 = vmatprep.subr.mxu0 0.0
    %166 = vmatpush1.msra.mxu0 0.0
    %167 = vmatprep.subr.mxu0 0.0
    %168 = vmatpush1.msra.mxu0 0.0
    %169 = vmatprep.subr.mxu0 0.0
    %170 = vmatpush1.msra.mxu0 0.0
    %171 = vmatprep.subr.mxu0 0.0
    %172 = vmatpush1.msra.mxu0 0.0
    %173 = vmatprep.subr.mxu0 0.0
    %174 = vmatpush1.msra.mxu0 0.0
    %175 = vmatprep.subr.mxu0 0.0
    %176 = vmatpush1.msra.mxu0 0.0
    %177 = vmatprep.subr.mxu0 0.0
    %178 = vmatpush1.msra.mxu0 0.0
    %179 = vmatprep.subr.mxu0 0.0
    %180 = vmatpush1.msra.mxu0 0.0
    %181 = vmatprep.subr.mxu0 0.0
    %182 = vmatpush1.msra.mxu0 0.0
    %183 = vmatprep.subr.mxu0 0.0
    %184 = vmatpush1.msra.mxu0 0.0
    %185 = vmatprep.subr.mxu0 0.0
    %186 = vmatpush1.msra.mxu0 0.0
    %187 = vmatprep.subr.mxu0 0.0
    %188 = vmatpush1.msra.mxu0 0.0
    %189 = vmatprep.subr.mxu0 0.0
    %190 = vmatpush1.msra.mxu0 0.0
    %191 = vmatprep.subr.mxu0 0.0
    %192 = vmatpush1.msra.mxu0 0.0
    %193 = vmatprep.subr.mxu0 0.0
    %194 = vmatpush1.msra.mxu0 0.0
    %195 = vmatprep.subr.mxu0 0.0
    %196 = vmatpush1.msra.mxu0 0.0
    %197 = vmatprep.subr.mxu0 0.0
    %198 = vmatpush1.msra.mxu0 0.0
    %199 = vmatprep.subr.mxu0 0.0
    %200 = vmatpush1.msra.mxu0 0.0
    %201 = vmatprep.subr.mxu0 0.0
    %202 = vmatpush1.msra.mxu0 0.0
    %203 = vmatprep.mubr.f32.mxu0 0.0
    %204 = vmatmul.mubr.f32.gmra.mrb[0].mxu0 %v137
    %v205 = vpop.f32.mrb[0].mxu0
    %v206 = vadd.f32 %v133, %v205
    %v207 = vpop.f32.mrb[0].mxu0
    %208 = vdwg.mxu0
    %vm209 = vcmask 523264
    %v210 = vsel %vm209, %v206, 0.0
    %v211 = vrot.slane %v210, 4
    %v212 = vadd.f32 %v210, %v211
    %v213 = vrot.slane %v212, 2
    %v214 = vadd.f32 %v212, %v213
    %v215 = vrot.slane %v214, 1
    %v216 = vadd.f32 %v214, %v215
    %v217 = vrcp.pop 8.0
    %v218 = vmul.f32 %v216, %v217
    %v219 = vmul.f32 %v206, %v206
    %v220 = vsel %vm209, %v219, 0.0
    %v221 = vrot.slane %v220, 4
    %v222 = vadd.f32 %v220, %v221
    %v223 = vrot.slane %v222, 2
    %v224 = vadd.f32 %v222, %v223
    %v225 = vrot.slane %v224, 1
    %v226 = vadd.f32 %v224, %v225
    %v227 = vmul.f32 %v226, %v217
    %v228 = vmul.f32 %v218, %v218
    %v229 = vsub.f32 %v227, %v228
    %v230 = vld [vmem:[#allocation7 + $0x40] sm:$0x1]
    %v231 = vld [vmem:[#allocation7 + $0x41] sm:$0x1]
    %v232 = vsub.f32 %v206, %v218
    %v233 = vadd.f32 %v229, 1e-05
    %v234 = vrsqrt.pop %v233
    %v235 = vmul.f32 %v232, %v234
    %v236 = vlaneseq
    %v237 = vshrl.u32 %v236, 7
    %v238 = vsub.s32 0, %v237
    %v239 = vrot.slane %v230, %v238
    %v240 = vmul.f32 %v235, %v239
    %v241 = vlaneseq
    %v242 = vshrl.u32 %v241, 7
    %v243 = vsub.s32 0, %v242
    %v244 = vrot.slane %v231, %v243
    %v245 = vadd.f32 %v240, %v244
    %vm246 = vcmp.gt.f32.partialorder %v245, 0.0
    %v247 = vmul.f32 %v245, 0.2
    %v248 = vsel %vm246, %v245, %v247
    %v249 = vld [vmem:[#allocation7] sm:$0xff]
    %v250 = vld [vmem:[#allocation7 + $0x8] sm:$0xff]
    %v251 = vld [vmem:[#allocation7 + $0x10] sm:$0xff]
    %v252 = vld [vmem:[#allocation7 + $0x18] sm:$0xff]
    %v253 = vld [vmem:[#allocation7 + $0x42] sm:$0x1]
    %v254 = vlaneseq
    %v255 = vshrl.u32 %v254, 7
    %v256 = vsub.s32 0, %v255
    %v257 = vrot.slane %v253, %v256
    %266 = vrot.lane.b32.xlu0 %v249, 64
    %v267 = vpop.permute.xlu0 %266
    %268 = vrot.lane.b32.xlu0 %v250, 64
    %v269 = vpop.permute.xlu0 %268
    %270 = vrot.lane.b32.xlu0 %v251, 64
    %v271 = vpop.permute.xlu0 %270
    %272 = vrot.lane.b32.xlu0 %v252, 64
    %v273 = vpop.permute.xlu0 %272
    %274 = vrot.lane.b32.xlu0 %v58, 64
    %v275 = vpop.permute.xlu0 %274
    %276 = vrot.lane.b32.xlu0 %v59, 64
    %v277 = vpop.permute.xlu0 %276
    %278 = vrot.lane.b32.xlu0 %v60, 64
    %v279 = vpop.permute.xlu0 %278
    %280 = vrot.lane.b32.xlu0 %v61, 64
    %v281 = vpop.permute.xlu0 %280
    %v291 = vsel %vm209, %v248, 0
    %293 = vmatprep.subr.mxu0 0.0
    %294 = vmatpush1.msra.mxu0 %v267
    %295 = vmatprep.subr.mxu0 0.0
    %296 = vmatpush1.msra.mxu0 %v269
    %297 = vmatprep.subr.mxu0 0.0
    %298 = vmatpush1.msra.mxu0 %v271
    %299 = vmatprep.subr.mxu0 0.0
    %300 = vmatpush1.msra.mxu0 %v273
    %301 = vmatprep.subr.mxu0 0.0
    %302 = vmatpush1.msra.mxu0 %v275
    %303 = vmatprep.subr.mxu0 0.0
    %304 = vmatpush1.msra.mxu0 %v277
    %305 = vmatprep.subr.mxu0 0.0
    %306 = vmatpush1.msra.mxu0 %v279
    %307 = vmatprep.subr.mxu0 0.0
    %308 = vmatpush1.msra.mxu0 %v281
    %309 = vmatprep.subr.mxu0 0.0
    %310 = vmatpush1.msra.mxu0 0.0
    %311 = vmatprep.subr.mxu0 0.0
    %312 = vmatpush1.msra.mxu0 0.0
    %313 = vmatprep.subr.mxu0 0.0
    %314 = vmatpush1.msra.mxu0 0.0
    %315 = vmatprep.subr.mxu0 0.0
    %316 = vmatpush1.msra.mxu0 0.0
    %317 = vmatprep.subr.mxu0 0.0
    %318 = vmatpush1.msra.mxu0 0.0
    %319 = vmatprep.subr.mxu0 0.0
    %320 = vmatpush1.msra.mxu0 0.0
    %321 = vmatprep.subr.mxu0 0.0
    %322 = vmatpush1.msra.mxu0 0.0
    %323 = vmatprep.subr.mxu0 0.0
    %324 = vmatpush1.msra.mxu0 0.0
    %325 = vmatprep.subr.mxu0 0.0
    %326 = vmatpush1.msra.mxu0 0.0
    %327 = vmatprep.subr.mxu0 0.0
    %328 = vmatpush1.msra.mxu0 0.0
    %329 = vmatprep.subr.mxu0 0.0
    %330 = vmatpush1.msra.mxu0 0.0
    %331 = vmatprep.subr.mxu0 0.0
    %332 = vmatpush1.msra.mxu0 0.0
    %333 = vmatprep.subr.mxu0 0.0
    %334 = vmatpush1.msra.mxu0 0.0
    %335 = vmatprep.subr.mxu0 0.0
    %336 = vmatpush1.msra.mxu0 0.0
    %337 = vmatprep.subr.mxu0 0.0
    %338 = vmatpush1.msra.mxu0 0.0
    %339 = vmatprep.subr.mxu0 0.0
    %340 = vmatpush1.msra.mxu0 0.0
    %341 = vmatprep.subr.mxu0 0.0
    %342 = vmatpush1.msra.mxu0 0.0
    %343 = vmatprep.subr.mxu0 0.0
    %344 = vmatpush1.msra.mxu0 0.0
    %345 = vmatprep.subr.mxu0 0.0
    %346 = vmatpush1.msra.mxu0 0.0
    %347 = vmatprep.subr.mxu0 0.0
    %348 = vmatpush1.msra.mxu0 0.0
    %349 = vmatprep.subr.mxu0 0.0
    %350 = vmatpush1.msra.mxu0 0.0
    %351 = vmatprep.subr.mxu0 0.0
    %352 = vmatpush1.msra.mxu0 0.0
    %353 = vmatprep.subr.mxu0 0.0
    %354 = vmatpush1.msra.mxu0 0.0
    %355 = vmatprep.subr.mxu0 0.0
    %356 = vmatpush1.msra.mxu0 0.0
    %357 = vmatprep.mubr.f32.mxu0 0.0
    %358 = vmatmul.mubr.f32.gmra.mrb[0].mxu0 %v291
    %v359 = vpop.f32.mrb[0].mxu0
    %v360 = vadd.f32 %v257, %v359
    %v361 = vpop.f32.mrb[0].mxu0
    %362 = vdwg.mxu0
    %vm363 = vcmask 64512
    %364 = vst.msk [vmem:[#allocation8] sm:$0xff] %vm363, %v360
    // Predicated region
    $region26: #{tpu_custom_call.1} parent=1 // pred_check
      _
    $region27: #{tpu_custom_call.1} parent=1 // pred_check_branch
      %366 = sbr.rel (0) target = $region29
    $region28: #{tpu_custom_call.1} parent=1 // pred_region
      %s368 = ssub.s32 128, 128
      %369 = vsyncadd [#allocation4], %s368
      %s371 = sshll.u32 [#allocation8], 4
      %s372 = int_to_ptr.vmem [resolvable:$true] %s371
      %374 = dma.vmem_to_hbm [thread:$0]  %s372, 128, %s3, [#allocation4]
    $region29: #{tpu_custom_call.1} parent=1 // pred_fallthru
      _
    // Predicated region
    $region30: #{tpu_custom_call.1} parent=1 // pred_check
      _
    $region31: #{tpu_custom_call.1} parent=1 // pred_check_branch
      %376 = sbr.rel (0) target = $region33
    $region32: #{tpu_custom_call.1} parent=1 // pred_region
      %377 = dma.done [#allocation4], 128
    $region33: #{tpu_custom_call.1} parent=1 // pred_fallthru
      _
    %378 = vsyncpa [#allocation3], 1
    %379 = vsyncpa [#allocation6], 1
    %380 = vsyncpa [#allocation4], 1

</llo_original>
